<compile_context>
chip_gen: v7x
topology: tpu7x:2x2x1
jax: 0.10.0
libtpu: 0.0.40
codegen_flags: <defaults>
</compile_context>

<pallas_src>
import math

import jax
import jax.numpy as jnp
from jax import lax
from jax.experimental import pallas as pl
from jax.experimental.pallas import tpu as pltpu


def _ale_kernel(lam_ref, c_ref, sel_ref, out_ref):
    """Compute one (TR, L) tile of the positional encoding.

    lam_ref: VMEM (TR, G+1)  packed lambda rows, trailing column == 1.0
    c_ref:   VMEM (1, G+1)   [C, C, ..., C, 1.0]  (resident)
    sel_ref: VMEM (G+1, L)   block-diag div_term rows + phase row (resident)
    out_ref: VMEM (TR, L)    L = G * d_model (lane dense, multiple of 128)
    """
    lam_scaled = lam_ref[...] * c_ref[...]            # (TR, G+1): lam*C; ones col stays 1
    # MXU: expand each packed lambda across its d_model-wide lane segment, scale by
    # div_term and add the sin/cos phase, all in one pass (cost independent of G).
    arg = jnp.dot(lam_scaled, sel_ref[...],
                  preferred_element_type=jnp.float32,
                  precision=lax.Precision.HIGHEST)
    # cos(x) == sin(x + pi/2): exactly one EUP transcendental per output element.
    out_ref[...] = jnp.sin(arg).astype(out_ref.dtype)


def _round_up(x: int, m: int) -> int:
    return -(-x // m) * m


def _pick_row_tile(prows: int, max_tr: int) -> int:
    """Pick the packed-row tile: a multiple of 8, or the full row count."""
    if prows <= 8:
        return prows                                   # single full-dim tile (legal)
    if prows <= max_tr:
        # Split into >= 2 grid steps (keeps both v7x TensorCores busy), but only if
        # it can be done with a clean divisor (no padding / no post-kernel copy).
        if prows >= 16 and prows % 8 == 0:
            target = _round_up(prows // 2, 8)
            for cand in range(target, max(7, target // 2 - 1), -8):
                if prows % cand == 0:
                    return cand
        return prows
    # Large case: bounded divisor search (only accept >= max_tr/2); otherwise pad a
    # few rows and keep the big tile rather than collapsing to tiny tiles.
    for cand in range(max_tr, max(7, max_tr // 2 - 1), -8):
        if prows % cand == 0:
            return cand
    return max_tr


def adaptive_lambda_encoding(lambda_val: jax.Array, C, d_model: int,
                             *, target_block_bytes: int = 2 << 20,
                             out_dtype=None) -> jax.Array:
    """Pallas implementation of AdaptiveLambdaEncoding.forward.

    lambda_val: (N, H) float array
    C:          scalar learnable scale
    returns:    (N, H, d_model), dtype of lambda_val (or out_dtype if given)
    """
    assert d_model % 2 == 0, "d_model must be even"
    N, H = lambda_val.shape
    rows = N * H
    out_dtype = lambda_val.dtype if out_dtype is None else out_dtype
    if rows == 0:
        return jnp.zeros((N, H, d_model), dtype=out_dtype)

    # Lane packing factor: L = G * d_model is a multiple of 128 (unmasked stores).
    G = 128 // math.gcd(d_model, 128)
    L = G * d_model
    prows = -(-rows // G)                              # packed rows (ceil)

    out_bytes = jnp.dtype(out_dtype).itemsize
    max_tr = max(8, min(4096, (target_block_bytes // (L * out_bytes)) // 8 * 8))
    tr = _pick_row_tile(prows, max_tr)
    prows_p = _round_up(prows, tr)
    padded = (prows_p * G != rows)

    # Packed lambda rows with a trailing ones column (drives the phase row of Sel).
    lam_flat = lambda_val.reshape(-1).astype(jnp.float32)
    if padded:
        lam_flat = jnp.pad(lam_flat, (0, prows_p * G - rows))
    lam_packed = lam_flat.reshape(prows_p, G)
    lam_aug = jnp.concatenate(
        [lam_packed, jnp.ones((prows_p, 1), jnp.float32)], axis=1)   # (prows_p, G+1)

    # Sel: block-diagonal "expand and scale" matrix plus a phase row.
    j = jnp.arange(0, d_model, 2, dtype=jnp.float32)
    div_term = jnp.exp(j * (-math.log(10000.0) / d_model))           # (d_model/2,)
    div_rep = jnp.repeat(div_term, 2)                                # (d_model,)
    sel_top = jnp.kron(jnp.eye(G, dtype=jnp.float32), div_rep[None, :])   # (G, L)
    phase = jnp.tile(jnp.array([0.0, math.pi / 2.0], dtype=jnp.float32), L // 2)
    sel = jnp.concatenate([sel_top, phase[None, :]], axis=0)         # (G+1, L)

    # [C, ..., C, 1]: scales the lambda columns, leaves the ones column alone, so
    # the (lam*C)*div rounding order of the reference is preserved.
    c_vec = jnp.concatenate(
        [jnp.full((1, G), C, dtype=jnp.float32),
         jnp.ones((1, 1), jnp.float32)], axis=1)                     # (1, G+1)

    # VMEM budget: 2x output tile (double-buffered) + f32 intermediates + inputs.
    vmem_need = (2 * tr * L * out_bytes
                 + 3 * tr * L * 4
                 + 4 * tr * (G + 1) * 4
                 + 4 * (G + 1) * L * 4
                 + (2 << 20))
    vmem_limit = int(min(max(vmem_need, 16 << 20), 48 << 20))   # safe on v7x 64 MiB

    grid = (prows_p // tr,)
    out = pl.pallas_call(
        _ale_kernel,
        out_shape=jax.ShapeDtypeStruct((prows_p, L), out_dtype),
        grid=grid,
        in_specs=[
            pl.BlockSpec((tr, G + 1), lambda i: (i, 0)),    # packed lambda rows
            pl.BlockSpec((1, G + 1), lambda i: (0, 0)),     # [C,...,C,1] (resident)
            pl.BlockSpec((G + 1, L), lambda i: (0, 0)),     # Sel (resident)
        ],
        out_specs=pl.BlockSpec((tr, L), lambda i: (i, 0)),
        compiler_params=pltpu.CompilerParams(
            dimension_semantics=("parallel",),
            vmem_limit_bytes=vmem_limit),
    )(lam_aug, c_vec, sel)

    if padded:
        # Only on awkward shapes (rows not divisible by the chosen tiling).
        out = out.reshape(prows_p * G, d_model)[:rows]
        return out.reshape(N, H, d_model)
    # (prows, L) -> (N, H, d_model) is a bitcast-compatible row-major reshape.
    return out.reshape(N, H, d_model)


def _reference(lambda_val, C, d_model):
    # Pure-JAX reference matching the PyTorch forward exactly.
    j = jnp.arange(0, d_model, 2, dtype=jnp.float32)
    div_term = jnp.exp(j * (-math.log(10000.0) / d_model))
    lam_scaled = lambda_val[..., None] * C                 # (N, H, 1)
    args = lam_scaled * div_term[None, None, :]            # (N, H, d_model/2)
    pe = jnp.zeros((*lambda_val.shape, d_model), dtype=lambda_val.dtype)
    pe = pe.at[..., 0::2].set(jnp.sin(args))
    pe = pe.at[..., 1::2].set(jnp.cos(args))
    return pe


if __name__ == "__main__":
    key = jax.random.PRNGKey(0)
    C = jnp.float32(100.0)                  # deterministic parameter init (as in __init__)

    # Small demo shape: N batches, H windows, even d_model (G = 4, L = 128).
    N, H, d_model = 2, 8, 32
    lambda_val = jax.random.uniform(key, (N, H), dtype=jnp.float32)   # lambda in [0, 1)

    pe = jax.block_until_ready(adaptive_lambda_encoding(lambda_val, C, d_model))
    ref = _reference(lambda_val, C, d_model)
    assert pe.shape == (N, H, d_model)
    # Odd lanes use sin(x + pi/2) == cos(x) and the multiply goes through the MXU at
    # HIGHEST precision; for |x| ~ C = 100 the combined deviation stays below ~3e-5.
    assert jnp.allclose(pe, ref, atol=5e-5, rtol=1e-5), "mismatch vs reference"

    # Second shape: H=100 windows (typical per the module docstring), d_model=64
    # exercises a different lane-packing factor (G = 2) and a non-multiple-of-8
    # packed row count (tr == full dim).
    lam2 = jax.random.uniform(jax.random.PRNGKey(1), (3, 100), dtype=jnp.float32)
    pe2 = jax.block_until_ready(adaptive_lambda_encoding(lam2, C, 64))
    ref2 = _reference(lam2, C, 64)
    assert pe2.shape == (3, 100, 64)
    assert jnp.allclose(pe2, ref2, atol=5e-5, rtol=1e-5), "mismatch vs reference (shape 2)"

    print("KERNEL_OK")
</pallas_src>

<mosaic_0001>
module attributes {stable_mosaic.version = 11 : i64} {
  func.func @_ale_kernel(%arg0: i32, %arg1: memref<4x5xf32, #tpu.memory_space<vmem>>, %arg2: memref<1x5xf32, #tpu.memory_space<vmem>>, %arg3: memref<5x128xf32, #tpu.memory_space<vmem>>, %arg4: memref<4x128xf32, #tpu.memory_space<vmem>>) attributes {dimension_semantics = [#tpu.dimension_semantics<parallel>], iteration_bounds = array<i64: 1>, scalar_prefetch = 0 : i64, scratch_operands = 0 : i64, tpu.core_type = #tpu.core_type<tc>, window_params = [{transform_indices = @transform_0, window_bounds = array<i64: 4, 5>}, {pipeline_mode = #tpu.pipeline_mode<synchronous>, transform_indices = @transform_1, window_bounds = array<i64: 1, 5>}, {pipeline_mode = #tpu.pipeline_mode<synchronous>, transform_indices = @transform_2, window_bounds = array<i64: 5, 128>}, {transform_indices = @transform_3, window_bounds = array<i64: 4, 128>}]} {
    %c0 = arith.constant 0 : index
    %c0_0 = arith.constant 0 : index
    %0 = vector.load %arg1[%c0, %c0_0] : memref<4x5xf32, #tpu.memory_space<vmem>>, vector<4x5xf32>
    %c0_1 = arith.constant 0 : index
    %c0_2 = arith.constant 0 : index
    %1 = vector.load %arg2[%c0_1, %c0_2] : memref<1x5xf32, #tpu.memory_space<vmem>>, vector<1x5xf32>
    %2 = vector.broadcast %1 : vector<1x5xf32> to vector<4x5xf32>
    %3 = arith.mulf %0, %2 : vector<4x5xf32>
    %c0_3 = arith.constant 0 : index
    %c0_4 = arith.constant 0 : index
    %4 = vector.load %arg3[%c0_3, %c0_4] : memref<5x128xf32, #tpu.memory_space<vmem>>, vector<5x128xf32>
    %cst = arith.constant dense<0.000000e+00> : vector<4x128xf32>
    %5 = tpu.matmul %3, %4, %cst {dimension_numbers = #tpu.dot_dimension_numbers<[1], [0], [0], [1], [0, 0, 1, 1], [], []>, precision = #tpu.contract_precision<fp32>} : vector<4x5xf32>, vector<5x128xf32>, vector<4x128xf32> -> vector<4x128xf32>
    %6 = math.sin %5 : vector<4x128xf32>
    %c0_5 = arith.constant 0 : index
    %c0_6 = arith.constant 0 : index
    %7 = vector.load %arg4[%c0_5, %c0_6] : memref<4x128xf32, #tpu.memory_space<vmem>>, vector<4x128xf32>
    tpu.vector_store %arg4[%c0_5, %c0_6], %6 {strides = array<i32>} : memref<4x128xf32, #tpu.memory_space<vmem>>, vector<4x128xf32>,
    return
  }
  func.func @transform_0(%arg0: i32) -> (i32, i32) {
    %c0_i32 = arith.constant 0 : i32
    %c0_i32_0 = arith.constant 0 : i32
    return %arg0, %c0_i32 : i32, i32
  }
  func.func @transform_1(%arg0: i32) -> (i32, i32) {
    %c0_i32 = arith.constant 0 : i32
    %c0_i32_0 = arith.constant 0 : i32
    %c0_i32_1 = arith.constant 0 : i32
    return %c0_i32, %c0_i32_0 : i32, i32
  }
  func.func @transform_2(%arg0: i32) -> (i32, i32) {
    %c0_i32 = arith.constant 0 : i32
    %c0_i32_0 = arith.constant 0 : i32
    %c0_i32_1 = arith.constant 0 : i32
    return %c0_i32, %c0_i32_0 : i32, i32
  }
  func.func @transform_3(%arg0: i32) -> (i32, i32) {
    %c0_i32 = arith.constant 0 : i32
    %c0_i32_0 = arith.constant 0 : i32
    return %arg0, %c0_i32 : i32, i32
  }
}

</mosaic_0001>

<llo_original>
// kernel: tpu_custom_call.1
$region0: #{tpu_custom_call.1}
  #allocation0 [shape = 'u32[]', space=smem, size = 0x4, offset = 0x4, fixed_abs, tag = 'smem constant byte address 0x4 - core index']
  #allocation1 [shape = 'u32[144,128]{1,0:T(1,128)}', space=vmem, size = 0x12000, scoped, tag = 'internal scratch']
  %s0 = inlined_call_operand.hbm [shape: f32[4,5], index: 0, kind: input, shape index: {}]
  %s1 = inlined_call_operand.vmem [shape: f32[1,5], index: 1, kind: input, shape index: {}]
  %s2 = inlined_call_operand.hbm [shape: f32[5,128], index: 2, kind: input, shape index: {}]
  %s3 = inlined_call_operand.hbm [shape: f32[4,128], index: 3, kind: output, shape index: {}]
  %s4 = sld [smem:[#allocation0]]
  $region30: #{tpu_custom_call.1} parent=0
    _
  %s6 = ssub.s32 1, %s4
  %s7 = scalar_select 0, %s6, %s4
  $region1: #{tpu_custom_call.1} parent=0
    #allocation2 [shape = 'u8[2048]{0}', space=vmem, size = 0x800, scoped, tag = 'input window, operand 0, single buffered']
    #allocation3 [shape = 's32[1]{0}', space=sflag, size = 0x4, scoped, tag = 'scoped memory for tpu_custom_call.1']
    #allocation4 [shape = 's32[1]{0}', space=sflag, size = 0x4, scoped, tag = 'scoped memory for tpu_custom_call.1']
    #allocation5 [shape = 'u8[4096]{0}', space=vmem, size = 0x1000, scoped, tag = 'input window, operand 2, single buffered']
    #allocation6 [shape = 's32[1]{0}', space=sflag, size = 0x4, scoped, tag = 'scoped memory for tpu_custom_call.1']
    #allocation7 [shape = 'u8[2048]{0}', space=vmem, size = 0x800, scoped, tag = 'output window, operand 0, single buffered']
    %8 = vsyncpa [#allocation3], 0
    %9 = vsyncpa [#allocation6], 0
    %10 = vsyncpa [#allocation4], 0
    // Predicated region
    $region2: #{tpu_custom_call.1} parent=1 // pred_check
      _
    $region3: #{tpu_custom_call.1} parent=1 // pred_check_branch
      %12 = sbr.rel (0) target = $region5
    $region4: #{tpu_custom_call.1} parent=1 // pred_region
      %s14 = ssub.s32 64, 64
      %15 = vsyncadd [#allocation3], %s14
      %s17 = sshll.u32 [#allocation2], 4
      %s18 = int_to_ptr.vmem [resolvable:$true] %s17
      %20 = dma.hbm_to_vmem [thread:$0]  %s0, 64, %s18, [#allocation3]
    $region5: #{tpu_custom_call.1} parent=1 // pred_fallthru
      _
    // Predicated region
    $region6: #{tpu_custom_call.1} parent=1 // pred_check
      _
    $region7: #{tpu_custom_call.1} parent=1 // pred_check_branch
      %22 = sbr.rel (0) target = $region9
    $region8: #{tpu_custom_call.1} parent=1 // pred_region
      _
    $region9: #{tpu_custom_call.1} parent=1 // pred_fallthru
      _
    // Predicated region
    $region10: #{tpu_custom_call.1} parent=1 // pred_check
      _
    $region11: #{tpu_custom_call.1} parent=1 // pred_check_branch
      %24 = sbr.rel (0) target = $region13
    $region12: #{tpu_custom_call.1} parent=1 // pred_region
      %s26 = ssub.s32 128, 128
      %27 = vsyncadd [#allocation6], %s26
      %s29 = sshll.u32 [#allocation5], 4
      %s30 = int_to_ptr.vmem [resolvable:$true] %s29
      %32 = dma.hbm_to_vmem [thread:$0]  %s2, 128, %s30, [#allocation6]
    $region13: #{tpu_custom_call.1} parent=1 // pred_fallthru
      _
    // Predicated region
    $region14: #{tpu_custom_call.1} parent=1 // pred_check
      _
    $region15: #{tpu_custom_call.1} parent=1 // pred_check_branch
      %34 = sbr.rel (0) target = $region17
    $region16: #{tpu_custom_call.1} parent=1 // pred_region
      %35 = dma.done [#allocation3], 64
    $region17: #{tpu_custom_call.1} parent=1 // pred_fallthru
      _
    // Predicated region
    $region18: #{tpu_custom_call.1} parent=1 // pred_check
      _
    $region19: #{tpu_custom_call.1} parent=1 // pred_check_branch
      %37 = sbr.rel (0) target = $region21
    $region20: #{tpu_custom_call.1} parent=1 // pred_region
      %38 = dma.done [#allocation6], 128
    $region21: #{tpu_custom_call.1} parent=1 // pred_fallthru
      _
    %v39 = vld [vmem:[#allocation2] sm:$0xf]
    %v40 = vld [vmem:[%s1] sm:$0x1]
    %v42 = vlaneseq
    %v43 = vshrl.u32 %v42, 7
    %v44 = vsub.s32 0, %v43
    %v45 = vrot.slane %v40, %v44
    %v47 = vmul.f32 %v39, %v45
    %v48 = vld [vmem:[#allocation5] sm:$0x1f]
    %vm49 = vcmask 39936
    %v51 = vsel %vm49, %v47, 0
    %vm53 = vcmask 1044480
    %v55 = vsel %vm53, %v48, 0
    %57 = vmatprep.subr.mxu0 0.0
    %v58 = vand.u32 %v55, 4294901760
    %59 = vmatpush1.msra.mxu0 %v58
    %60 = vmatprep.subr.mxu0 0.0
    %61 = vmatpush1.msra.mxu0 0.0
    %62 = vmatprep.subr.mxu0 0.0
    %63 = vmatpush1.msra.mxu0 0.0
    %64 = vmatprep.subr.mxu0 0.0
    %65 = vmatpush1.msra.mxu0 0.0
    %66 = vmatprep.subr.mxu0 0.0
    %67 = vmatpush1.msra.mxu0 0.0
    %68 = vmatprep.subr.mxu0 0.0
    %69 = vmatpush1.msra.mxu0 0.0
    %70 = vmatprep.subr.mxu0 0.0
    %71 = vmatpush1.msra.mxu0 0.0
    %72 = vmatprep.subr.mxu0 0.0
    %73 = vmatpush1.msra.mxu0 0.0
    %74 = vmatprep.subr.mxu0 0.0
    %75 = vmatpush1.msra.mxu0 0.0
    %76 = vmatprep.subr.mxu0 0.0
    %77 = vmatpush1.msra.mxu0 0.0
    %78 = vmatprep.subr.mxu0 0.0
    %79 = vmatpush1.msra.mxu0 0.0
    %80 = vmatprep.subr.mxu0 0.0
    %81 = vmatpush1.msra.mxu0 0.0
    %82 = vmatprep.subr.mxu0 0.0
    %83 = vmatpush1.msra.mxu0 0.0
    %84 = vmatprep.subr.mxu0 0.0
    %85 = vmatpush1.msra.mxu0 0.0
    %86 = vmatprep.subr.mxu0 0.0
    %87 = vmatpush1.msra.mxu0 0.0
    %88 = vmatprep.subr.mxu0 0.0
    %89 = vmatpush1.msra.mxu0 0.0
    %90 = vmatprep.subr.mxu0 0.0
    %91 = vmatpush1.msra.mxu0 0.0
    %92 = vmatprep.subr.mxu0 0.0
    %93 = vmatpush1.msra.mxu0 0.0
    %94 = vmatprep.subr.mxu0 0.0
    %95 = vmatpush1.msra.mxu0 0.0
    %96 = vmatprep.subr.mxu0 0.0
    %97 = vmatpush1.msra.mxu0 0.0
    %98 = vmatprep.subr.mxu0 0.0
    %99 = vmatpush1.msra.mxu0 0.0
    %100 = vmatprep.subr.mxu0 0.0
    %101 = vmatpush1.msra.mxu0 0.0
    %102 = vmatprep.subr.mxu0 0.0
    %103 = vmatpush1.msra.mxu0 0.0
    %104 = vmatprep.subr.mxu0 0.0
    %105 = vmatpush1.msra.mxu0 0.0
    %106 = vmatprep.subr.mxu0 0.0
    %107 = vmatpush1.msra.mxu0 0.0
    %108 = vmatprep.subr.mxu0 0.0
    %109 = vmatpush1.msra.mxu0 0.0
    %110 = vmatprep.subr.mxu0 0.0
    %111 = vmatpush1.msra.mxu0 0.0
    %112 = vmatprep.subr.mxu0 0.0
    %113 = vmatpush1.msra.mxu0 0.0
    %114 = vmatprep.subr.mxu0 0.0
    %115 = vmatpush1.msra.mxu0 0.0
    %116 = vmatprep.subr.mxu0 0.0
    %117 = vmatpush1.msra.mxu0 0.0
    %118 = vmatprep.subr.mxu0 0.0
    %119 = vmatpush1.msra.mxu0 0.0
    %120 = vmatprep.subr.mxu0 0.0
    %121 = vmatpush1.msra.mxu0 0.0
    %122 = vmatprep.mubr.f32.mxu0 0.0
    %v123 = vand.u32 %v51, 4294901760
    %v124 = vsub.f32 %v51, %v123
    %v125 = vand.u32 %v124, 4294901760
    %v126 = vsub.f32 %v124, %v125
    %v127 = vand.u32 %v126, 4294901760
    %128 = vmatmul.mubr.f32.gmra.mrb[0].mxu0 %v127
    %v129 = vpop.f32.mrb[0].mxu0
    %v130 = vadd.f32 0.0, %v129
    %v131 = vpop.f32.mrb[0].mxu0
    %132 = vdwg.mxu0
    %133 = vmatprep.subr.mxu0 0.0
    %v134 = vand.u32 %v55, 4294901760
    %v135 = vsub.f32 %v55, %v134
    %v136 = vand.u32 %v135, 4294901760
    %v137 = vsub.f32 %v135, %v136
    %v138 = vand.u32 %v137, 4294901760
    %139 = vmatpush1.msra.mxu0 %v138
    %140 = vmatprep.subr.mxu0 0.0
    %141 = vmatpush1.msra.mxu0 0.0
    %142 = vmatprep.subr.mxu0 0.0
    %143 = vmatpush1.msra.mxu0 0.0
    %144 = vmatprep.subr.mxu0 0.0
    %145 = vmatpush1.msra.mxu0 0.0
    %146 = vmatprep.subr.mxu0 0.0
    %147 = vmatpush1.msra.mxu0 0.0
    %148 = vmatprep.subr.mxu0 0.0
    %149 = vmatpush1.msra.mxu0 0.0
    %150 = vmatprep.subr.mxu0 0.0
    %151 = vmatpush1.msra.mxu0 0.0
    %152 = vmatprep.subr.mxu0 0.0
    %153 = vmatpush1.msra.mxu0 0.0
    %154 = vmatprep.subr.mxu0 0.0
    %155 = vmatpush1.msra.mxu0 0.0
    %156 = vmatprep.subr.mxu0 0.0
    %157 = vmatpush1.msra.mxu0 0.0
    %158 = vmatprep.subr.mxu0 0.0
    %159 = vmatpush1.msra.mxu0 0.0
    %160 = vmatprep.subr.mxu0 0.0
    %161 = vmatpush1.msra.mxu0 0.0
    %162 = vmatprep.subr.mxu0 0.0
    %163 = vmatpush1.msra.mxu0 0.0
    %164 = vmatprep.subr.mxu0 0.0
    %165 = vmatpush1.msra.mxu0 0.0
    %166 = vmatprep.subr.mxu0 0.0
    %167 = vmatpush1.msra.mxu0 0.0
    %168 = vmatprep.subr.mxu0 0.0
    %169 = vmatpush1.msra.mxu0 0.0
    %170 = vmatprep.subr.mxu0 0.0
    %171 = vmatpush1.msra.mxu0 0.0
    %172 = vmatprep.subr.mxu0 0.0
    %173 = vmatpush1.msra.mxu0 0.0
    %174 = vmatprep.subr.mxu0 0.0
    %175 = vmatpush1.msra.mxu0 0.0
    %176 = vmatprep.subr.mxu0 0.0
    %177 = vmatpush1.msra.mxu0 0.0
    %178 = vmatprep.subr.mxu0 0.0
    %179 = vmatpush1.msra.mxu0 0.0
    %180 = vmatprep.subr.mxu0 0.0
    %181 = vmatpush1.msra.mxu0 0.0
    %182 = vmatprep.subr.mxu0 0.0
    %183 = vmatpush1.msra.mxu0 0.0
    %184 = vmatprep.subr.mxu0 0.0
    %185 = vmatpush1.msra.mxu0 0.0
    %186 = vmatprep.subr.mxu0 0.0
    %187 = vmatpush1.msra.mxu0 0.0
    %188 = vmatprep.subr.mxu0 0.0
    %189 = vmatpush1.msra.mxu0 0.0
    %190 = vmatprep.subr.mxu0 0.0
    %191 = vmatpush1.msra.mxu0 0.0
    %192 = vmatprep.subr.mxu0 0.0
    %193 = vmatpush1.msra.mxu0 0.0
    %194 = vmatprep.subr.mxu0 0.0
    %195 = vmatpush1.msra.mxu0 0.0
    %196 = vmatprep.subr.mxu0 0.0
    %197 = vmatpush1.msra.mxu0 0.0
    %198 = vmatprep.subr.mxu0 0.0
    %199 = vmatpush1.msra.mxu0 0.0
    %200 = vmatprep.subr.mxu0 0.0
    %201 = vmatpush1.msra.mxu0 0.0
    %202 = vmatprep.mubr.f32.mxu0 0.0
    %v203 = vand.u32 %v51, 4294901760
    %204 = vmatmul.mubr.f32.gmra.mrb[0].mxu0 %v203
    %v205 = vpop.f32.mrb[0].mxu0
    %v206 = vadd.f32 %v130, %v205
    %v207 = vpop.f32.mrb[0].mxu0
    %208 = vdwg.mxu0
    %209 = vmatprep.subr.mxu0 0.0
    %v210 = vand.u32 %v55, 4294901760
    %v211 = vsub.f32 %v55, %v210
    %212 = vmatpush1.msra.mxu0 %v211
    %213 = vmatprep.subr.mxu0 0.0
    %214 = vmatpush1.msra.mxu0 0.0
    %215 = vmatprep.subr.mxu0 0.0
    %216 = vmatpush1.msra.mxu0 0.0
    %217 = vmatprep.subr.mxu0 0.0
    %218 = vmatpush1.msra.mxu0 0.0
    %219 = vmatprep.subr.mxu0 0.0
    %220 = vmatpush1.msra.mxu0 0.0
    %221 = vmatprep.subr.mxu0 0.0
    %222 = vmatpush1.msra.mxu0 0.0
    %223 = vmatprep.subr.mxu0 0.0
    %224 = vmatpush1.msra.mxu0 0.0
    %225 = vmatprep.subr.mxu0 0.0
    %226 = vmatpush1.msra.mxu0 0.0
    %227 = vmatprep.subr.mxu0 0.0
    %228 = vmatpush1.msra.mxu0 0.0
    %229 = vmatprep.subr.mxu0 0.0
    %230 = vmatpush1.msra.mxu0 0.0
    %231 = vmatprep.subr.mxu0 0.0
    %232 = vmatpush1.msra.mxu0 0.0
    %233 = vmatprep.subr.mxu0 0.0
    %234 = vmatpush1.msra.mxu0 0.0
    %235 = vmatprep.subr.mxu0 0.0
    %236 = vmatpush1.msra.mxu0 0.0
    %237 = vmatprep.subr.mxu0 0.0
    %238 = vmatpush1.msra.mxu0 0.0
    %239 = vmatprep.subr.mxu0 0.0
    %240 = vmatpush1.msra.mxu0 0.0
    %241 = vmatprep.subr.mxu0 0.0
    %242 = vmatpush1.msra.mxu0 0.0
    %243 = vmatprep.subr.mxu0 0.0
    %244 = vmatpush1.msra.mxu0 0.0
    %245 = vmatprep.subr.mxu0 0.0
    %246 = vmatpush1.msra.mxu0 0.0
    %247 = vmatprep.subr.mxu0 0.0
    %248 = vmatpush1.msra.mxu0 0.0
    %249 = vmatprep.subr.mxu0 0.0
    %250 = vmatpush1.msra.mxu0 0.0
    %251 = vmatprep.subr.mxu0 0.0
    %252 = vmatpush1.msra.mxu0 0.0
    %253 = vmatprep.subr.mxu0 0.0
    %254 = vmatpush1.msra.mxu0 0.0
    %255 = vmatprep.subr.mxu0 0.0
    %256 = vmatpush1.msra.mxu0 0.0
    %257 = vmatprep.subr.mxu0 0.0
    %258 = vmatpush1.msra.mxu0 0.0
    %259 = vmatprep.subr.mxu0 0.0
    %260 = vmatpush1.msra.mxu0 0.0
    %261 = vmatprep.subr.mxu0 0.0
    %262 = vmatpush1.msra.mxu0 0.0
    %263 = vmatprep.subr.mxu0 0.0
    %264 = vmatpush1.msra.mxu0 0.0
    %265 = vmatprep.subr.mxu0 0.0
    %266 = vmatpush1.msra.mxu0 0.0
    %267 = vmatprep.subr.mxu0 0.0
    %268 = vmatpush1.msra.mxu0 0.0
    %269 = vmatprep.subr.mxu0 0.0
    %270 = vmatpush1.msra.mxu0 0.0
    %271 = vmatprep.subr.mxu0 0.0
    %272 = vmatpush1.msra.mxu0 0.0
    %273 = vmatprep.subr.mxu0 0.0
    %274 = vmatpush1.msra.mxu0 0.0
    %275 = vmatprep.mubr.f32.mxu0 0.0
    %v276 = vand.u32 %v51, 4294901760
    %v277 = vsub.f32 %v51, %v276
    %278 = vmatmul.mubr.f32.gmra.mrb[0].mxu0 %v277
    %v279 = vpop.f32.mrb[0].mxu0
    %v280 = vadd.f32 %v206, %v279
    %v281 = vpop.f32.mrb[0].mxu0
    %282 = vdwg.mxu0
    %283 = vmatprep.subr.mxu0 0.0
    %v284 = vand.u32 %v55, 4294901760
    %285 = vmatpush1.msra.mxu0 %v284
    %286 = vmatprep.subr.mxu0 0.0
    %287 = vmatpush1.msra.mxu0 0.0
    %288 = vmatprep.subr.mxu0 0.0
    %289 = vmatpush1.msra.mxu0 0.0
    %290 = vmatprep.subr.mxu0 0.0
    %291 = vmatpush1.msra.mxu0 0.0
    %292 = vmatprep.subr.mxu0 0.0
    %293 = vmatpush1.msra.mxu0 0.0
    %294 = vmatprep.subr.mxu0 0.0
    %295 = vmatpush1.msra.mxu0 0.0
    %296 = vmatprep.subr.mxu0 0.0
    %297 = vmatpush1.msra.mxu0 0.0
    %298 = vmatprep.subr.mxu0 0.0
    %299 = vmatpush1.msra.mxu0 0.0
    %300 = vmatprep.subr.mxu0 0.0
    %301 = vmatpush1.msra.mxu0 0.0
    %302 = vmatprep.subr.mxu0 0.0
    %303 = vmatpush1.msra.mxu0 0.0
    %304 = vmatprep.subr.mxu0 0.0
    %305 = vmatpush1.msra.mxu0 0.0
    %306 = vmatprep.subr.mxu0 0.0
    %307 = vmatpush1.msra.mxu0 0.0
    %308 = vmatprep.subr.mxu0 0.0
    %309 = vmatpush1.msra.mxu0 0.0
    %310 = vmatprep.subr.mxu0 0.0
    %311 = vmatpush1.msra.mxu0 0.0
    %312 = vmatprep.subr.mxu0 0.0
    %313 = vmatpush1.msra.mxu0 0.0
    %314 = vmatprep.subr.mxu0 0.0
    %315 = vmatpush1.msra.mxu0 0.0
    %316 = vmatprep.subr.mxu0 0.0
    %317 = vmatpush1.msra.mxu0 0.0
    %318 = vmatprep.subr.mxu0 0.0
    %319 = vmatpush1.msra.mxu0 0.0
    %320 = vmatprep.subr.mxu0 0.0
    %321 = vmatpush1.msra.mxu0 0.0
    %322 = vmatprep.subr.mxu0 0.0
    %323 = vmatpush1.msra.mxu0 0.0
    %324 = vmatprep.subr.mxu0 0.0
    %325 = vmatpush1.msra.mxu0 0.0
    %326 = vmatprep.subr.mxu0 0.0
    %327 = vmatpush1.msra.mxu0 0.0
    %328 = vmatprep.subr.mxu0 0.0
    %329 = vmatpush1.msra.mxu0 0.0
    %330 = vmatprep.subr.mxu0 0.0
    %331 = vmatpush1.msra.mxu0 0.0
    %332 = vmatprep.subr.mxu0 0.0
    %333 = vmatpush1.msra.mxu0 0.0
    %334 = vmatprep.subr.mxu0 0.0
    %335 = vmatpush1.msra.mxu0 0.0
    %336 = vmatprep.subr.mxu0 0.0
    %337 = vmatpush1.msra.mxu0 0.0
    %338 = vmatprep.subr.mxu0 0.0
    %339 = vmatpush1.msra.mxu0 0.0
    %340 = vmatprep.subr.mxu0 0.0
    %341 = vmatpush1.msra.mxu0 0.0
    %342 = vmatprep.subr.mxu0 0.0
    %343 = vmatpush1.msra.mxu0 0.0
    %344 = vmatprep.subr.mxu0 0.0
    %345 = vmatpush1.msra.mxu0 0.0
    %346 = vmatprep.subr.mxu0 0.0
    %347 = vmatpush1.msra.mxu0 0.0
    %348 = vmatprep.mubr.f32.mxu0 0.0
    %v349 = vand.u32 %v51, 4294901760
    %v350 = vsub.f32 %v51, %v349
    %v351 = vand.u32 %v350, 4294901760
    %352 = vmatmul.mubr.f32.gmra.mrb[0].mxu0 %v351
    %v353 = vpop.f32.mrb[0].mxu0
    %v354 = vadd.f32 %v280, %v353
    %v355 = vpop.f32.mrb[0].mxu0
    %356 = vdwg.mxu0
    %357 = vmatprep.subr.mxu0 0.0
    %v358 = vand.u32 %v55, 4294901760
    %v359 = vsub.f32 %v55, %v358
    %v360 = vand.u32 %v359, 4294901760
    %361 = vmatpush1.msra.mxu0 %v360
    %362 = vmatprep.subr.mxu0 0.0
    %363 = vmatpush1.msra.mxu0 0.0
    %364 = vmatprep.subr.mxu0 0.0
    %365 = vmatpush1.msra.mxu0 0.0
    %366 = vmatprep.subr.mxu0 0.0
    %367 = vmatpush1.msra.mxu0 0.0
    %368 = vmatprep.subr.mxu0 0.0
    %369 = vmatpush1.msra.mxu0 0.0
    %370 = vmatprep.subr.mxu0 0.0
    %371 = vmatpush1.msra.mxu0 0.0
    %372 = vmatprep.subr.mxu0 0.0
    %373 = vmatpush1.msra.mxu0 0.0
    %374 = vmatprep.subr.mxu0 0.0
    %375 = vmatpush1.msra.mxu0 0.0
    %376 = vmatprep.subr.mxu0 0.0
    %377 = vmatpush1.msra.mxu0 0.0
    %378 = vmatprep.subr.mxu0 0.0
    %379 = vmatpush1.msra.mxu0 0.0
    %380 = vmatprep.subr.mxu0 0.0
    %381 = vmatpush1.msra.mxu0 0.0
    %382 = vmatprep.subr.mxu0 0.0
    %383 = vmatpush1.msra.mxu0 0.0
    %384 = vmatprep.subr.mxu0 0.0
    %385 = vmatpush1.msra.mxu0 0.0
    %386 = vmatprep.subr.mxu0 0.0
    %387 = vmatpush1.msra.mxu0 0.0
    %388 = vmatprep.subr.mxu0 0.0
    %389 = vmatpush1.msra.mxu0 0.0
    %390 = vmatprep.subr.mxu0 0.0
    %391 = vmatpush1.msra.mxu0 0.0
    %392 = vmatprep.subr.mxu0 0.0
    %393 = vmatpush1.msra.mxu0 0.0
    %394 = vmatprep.subr.mxu0 0.0
    %395 = vmatpush1.msra.mxu0 0.0
    %396 = vmatprep.subr.mxu0 0.0
    %397 = vmatpush1.msra.mxu0 0.0
    %398 = vmatprep.subr.mxu0 0.0
    %399 = vmatpush1.msra.mxu0 0.0
    %400 = vmatprep.subr.mxu0 0.0
    %401 = vmatpush1.msra.mxu0 0.0
    %402 = vmatprep.subr.mxu0 0.0
    %403 = vmatpush1.msra.mxu0 0.0
    %404 = vmatprep.subr.mxu0 0.0
    %405 = vmatpush1.msra.mxu0 0.0
    %406 = vmatprep.subr.mxu0 0.0
    %407 = vmatpush1.msra.mxu0 0.0
    %408 = vmatprep.subr.mxu0 0.0
    %409 = vmatpush1.msra.mxu0 0.0
    %410 = vmatprep.subr.mxu0 0.0
    %411 = vmatpush1.msra.mxu0 0.0
    %412 = vmatprep.subr.mxu0 0.0
    %413 = vmatpush1.msra.mxu0 0.0
    %414 = vmatprep.subr.mxu0 0.0
    %415 = vmatpush1.msra.mxu0 0.0
    %416 = vmatprep.subr.mxu0 0.0
    %417 = vmatpush1.msra.mxu0 0.0
    %418 = vmatprep.subr.mxu0 0.0
    %419 = vmatpush1.msra.mxu0 0.0
    %420 = vmatprep.subr.mxu0 0.0
    %421 = vmatpush1.msra.mxu0 0.0
    %422 = vmatprep.subr.mxu0 0.0
    %423 = vmatpush1.msra.mxu0 0.0
    %424 = vmatprep.mubr.f32.mxu0 0.0
    %v425 = vand.u32 %v51, 4294901760
    %426 = vmatmul.mubr.f32.gmra.mrb[0].mxu0 %v425
    %v427 = vpop.f32.mrb[0].mxu0
    %v428 = vadd.f32 %v354, %v427
    %v429 = vpop.f32.mrb[0].mxu0
    %430 = vdwg.mxu0
    %431 = vmatprep.subr.mxu0 0.0
    %v432 = vand.u32 %v55, 4294901760
    %433 = vmatpush1.msra.mxu0 %v432
    %434 = vmatprep.subr.mxu0 0.0
    %435 = vmatpush1.msra.mxu0 0.0
    %436 = vmatprep.subr.mxu0 0.0
    %437 = vmatpush1.msra.mxu0 0.0
    %438 = vmatprep.subr.mxu0 0.0
    %439 = vmatpush1.msra.mxu0 0.0
    %440 = vmatprep.subr.mxu0 0.0
    %441 = vmatpush1.msra.mxu0 0.0
    %442 = vmatprep.subr.mxu0 0.0
    %443 = vmatpush1.msra.mxu0 0.0
    %444 = vmatprep.subr.mxu0 0.0
    %445 = vmatpush1.msra.mxu0 0.0
    %446 = vmatprep.subr.mxu0 0.0
    %447 = vmatpush1.msra.mxu0 0.0
    %448 = vmatprep.subr.mxu0 0.0
    %449 = vmatpush1.msra.mxu0 0.0
    %450 = vmatprep.subr.mxu0 0.0
    %451 = vmatpush1.msra.mxu0 0.0
    %452 = vmatprep.subr.mxu0 0.0
    %453 = vmatpush1.msra.mxu0 0.0
    %454 = vmatprep.subr.mxu0 0.0
    %455 = vmatpush1.msra.mxu0 0.0
    %456 = vmatprep.subr.mxu0 0.0
    %457 = vmatpush1.msra.mxu0 0.0
    %458 = vmatprep.subr.mxu0 0.0
    %459 = vmatpush1.msra.mxu0 0.0
    %460 = vmatprep.subr.mxu0 0.0
    %461 = vmatpush1.msra.mxu0 0.0
    %462 = vmatprep.subr.mxu0 0.0
    %463 = vmatpush1.msra.mxu0 0.0
    %464 = vmatprep.subr.mxu0 0.0
    %465 = vmatpush1.msra.mxu0 0.0
    %466 = vmatprep.subr.mxu0 0.0
    %467 = vmatpush1.msra.mxu0 0.0
    %468 = vmatprep.subr.mxu0 0.0
    %469 = vmatpush1.msra.mxu0 0.0
    %470 = vmatprep.subr.mxu0 0.0
    %471 = vmatpush1.msra.mxu0 0.0
    %472 = vmatprep.subr.mxu0 0.0
    %473 = vmatpush1.msra.mxu0 0.0
    %474 = vmatprep.subr.mxu0 0.0
    %475 = vmatpush1.msra.mxu0 0.0
    %476 = vmatprep.subr.mxu0 0.0
    %477 = vmatpush1.msra.mxu0 0.0
    %478 = vmatprep.subr.mxu0 0.0
    %479 = vmatpush1.msra.mxu0 0.0
    %480 = vmatprep.subr.mxu0 0.0
    %481 = vmatpush1.msra.mxu0 0.0
    %482 = vmatprep.subr.mxu0 0.0
    %483 = vmatpush1.msra.mxu0 0.0
    %484 = vmatprep.subr.mxu0 0.0
    %485 = vmatpush1.msra.mxu0 0.0
    %486 = vmatprep.subr.mxu0 0.0
    %487 = vmatpush1.msra.mxu0 0.0
    %488 = vmatprep.subr.mxu0 0.0
    %489 = vmatpush1.msra.mxu0 0.0
    %490 = vmatprep.subr.mxu0 0.0
    %491 = vmatpush1.msra.mxu0 0.0
    %492 = vmatprep.subr.mxu0 0.0
    %493 = vmatpush1.msra.mxu0 0.0
    %494 = vmatprep.subr.mxu0 0.0
    %495 = vmatpush1.msra.mxu0 0.0
    %496 = vmatprep.mubr.f32.mxu0 0.0
    %v497 = vand.u32 %v51, 4294901760
    %498 = vmatmul.mubr.f32.gmra.mrb[0].mxu0 %v497
    %v499 = vpop.f32.mrb[0].mxu0
    %v500 = vadd.f32 %v428, %v499
    %v501 = vpop.f32.mrb[0].mxu0
    %502 = vdwg.mxu0
    %v503 = vand.u32 2147483647, %v500
    %vm504 = vcmp.le.f32.partialorder %v503, 0.7853982
    %vm505 = vcmp.lt.s32.totalorder %v500, 0
    %v506 = vand.u32 %v500, 2139095040
    %v507 = vshrl.u32 %v506, 23
    %v508 = vsub.s32 %v507, 127
    %v509 = vand.u32 2147483647, %v500
    %v510 = vand.u32 %v509, 8388607
    %v511 = vor.u32 %v510, 8388608
    %v512 = vsub.s32 0, %v511
    %v513 = vadd.s32 %v508, 1
    %vm514 = vcmp.gt.s32.totalorder %v513, 0
    %v515 = vsel %vm514, %v513, 0
    %v516 = vshrl.u32 %v515, 5
    %v517 = vand.u32 %v515, 31
    %v518 = vsub.s32 32, %v517
    %v519 = vshrl.u32 683565275, %v518
    %v520 = vshll.u32 683565275, %v517
    %v521 = vshrl.u32 2475754826, %v518
    %v522 = vor.u32 %v520, %v521
    %v523 = vshll.u32 2475754826, %v517
    %v524 = vshrl.u32 2131351028, %v518
    %v525 = vor.u32 %v523, %v524
    %v526 = vshll.u32 2131351028, %v517
    %v527 = vshrl.u32 2102212464, %v518
    %v528 = vor.u32 %v526, %v527
    %v529 = vshll.u32 2102212464, %v517
    %v530 = vshrl.u32 920167782, %v518
    %v531 = vor.u32 %v529, %v530
    %v532 = vshll.u32 920167782, %v517
    %v533 = vshrl.u32 1326507024, %v518
    %v534 = vor.u32 %v532, %v533
    %vm535 = vcmp.lt.s32.totalorder %v516, 1
    %vm536 = vcmp.lt.s32.totalorder %v516, 2
    %vm537 = vcmp.lt.s32.totalorder %v516, 3
    %vm538 = vcmp.lt.s32.totalorder %v516, 4
    %v539 = vsel %vm535, %v519, %v522
    %v540 = vsel %vm538, %v528, 2102212464
    %v541 = vsel %vm537, %v525, %v540
    %v542 = vsel %vm536, %v539, %v541
    %v543 = vsel %vm535, %v522, %v525
    %v544 = vsel %vm538, %v531, 920167782
    %v545 = vsel %vm537, %v528, %v544
    %v546 = vsel %vm536, %v543, %v545
    %v547 = vsel %vm535, %v525, %v528
    %v548 = vsel %vm538, %v534, 1326507024
    %v549 = vsel %vm537, %v531, %v548
    %v550 = vsel %vm536, %v547, %v549
    %v551 = vshll.u32 %v511, 8
    %v552 = vmul.u32.u64.compose %v551, %v550
    %v553 = vextract.low.u32 %v552
    %v554 = vextract.high.u32 %v552
    %v555 = vmul.u32.u64.compose %v551, %v546
    %v556 = vextract.low.u32 %v555
    %v557 = vextract.high.u32 %v555
    %v558 = vmul.u32 %v551, %v542
    %v559 = vadd.s32 %v554, %v556
    %vm560 = vc.u32 %v554, %v556
    %v561 = vadd.s32 %v557, 1
    %v562 = vsel %vm560, %v561, %v557
    %v563 = vadd.s32 %v558, %v562
    %v564 = vadd.s32 %v563, 536870912
    %v565 = vshrl.u32 %v564, 30
    %v566 = vshll.u32 %v565, 30
    %v567 = vsub.s32 %v563, %v566
    %vm568 = vcmp.lt.s32.totalorder %v567, 0
    %v569 = vsub.s32 0, %v567
    %v570 = vsel %vm568, %v569, %v567
    %v571 = vclz %v570
    %v572 = vsub.s32 %v571, 2
    %vm573 = vcmp.gt.s32.totalorder 0, %v572
    %v574 = vsel %vm573, 0, %v572
    %v575 = vsub.s32 32, %v574
    %v576 = vshll.u32 %v567, %v574
    %v577 = vshrl.u32 %v559, %v575
    %v578 = vor.u32 %v576, %v577
    %v579 = vsub.s32 4294967266, %v574
    %v580 = vadd.s32 %v579, 127
    %v581 = vshll.u32 %v580, 23
    %v582 = vor.u32 4788187, %v581
    %v583 = vand.u32 2147483647, %v582
    %v585 = vcvt.s32.f32 %v578
    %v586 = vmul.f32 %v585, %v583
    %v587 = vxor.u32 %v586, 2147483648
    %v588 = vsel %vm505, %v587, %v586
    %v589 = vsub.s32 4, %v565
    %v590 = vsel %vm505, %v589, %v565
    %v591 = vsel %vm504, %v500, %v588
    %v592 = vsel %vm504, 0, %v590
    %v593 = vcosq.f32.pop %v591
    %v594 = vsinq.f32.pop %v591
    %vm595 = vweird.f32 %v500
    %v596 = vadd.s32 %v592, 3
    %v597 = vand.u32 %v596, 3
    %vm598 = vcmp.lt.s32.totalorder %v597, 2
    %vm599 = vcmp.eq.s32.totalorder %v597, 0
    %v600 = vxor.u32 %v594, 2147483648
    %v601 = vsel %vm599, %v593, %v600
    %vm602 = vcmp.eq.s32.totalorder %v597, 2
    %v603 = vxor.u32 %v593, 2147483648
    %v604 = vsel %vm602, %v603, %v594
    %v605 = vsel %vm598, %v601, %v604
    %v606 = vsel %vm595, nan, %v605
    %607 = vst [vmem:[#allocation7] sm:$0xf] %v606
    // Predicated region
    $region22: #{tpu_custom_call.1} parent=1 // pred_check
      _
    $region23: #{tpu_custom_call.1} parent=1 // pred_check_branch
      %609 = sbr.rel (0) target = $region25
    $region24: #{tpu_custom_call.1} parent=1 // pred_region
      %s611 = ssub.s32 64, 64
      %612 = vsyncadd [#allocation4], %s611
      %s614 = sshll.u32 [#allocation7], 4
      %s615 = int_to_ptr.vmem [resolvable:$true] %s614
      %617 = dma.vmem_to_hbm [thread:$0]  %s615, 64, %s3, [#allocation4]
    $region25: #{tpu_custom_call.1} parent=1 // pred_fallthru
      _
    // Predicated region
    $region26: #{tpu_custom_call.1} parent=1 // pred_check
      _
    $region27: #{tpu_custom_call.1} parent=1 // pred_check_branch
      %619 = sbr.rel (0) target = $region29
    $region28: #{tpu_custom_call.1} parent=1 // pred_region
      %620 = dma.done [#allocation4], 64
    $region29: #{tpu_custom_call.1} parent=1 // pred_fallthru
      _
    %621 = vsyncpa [#allocation3], 1
    %622 = vsyncpa [#allocation6], 1
    %623 = vsyncpa [#allocation4], 1

</llo_original>
